<compile_context>
chip_gen: v5e
topology: v5e:2x2
jax: 0.10.0
libtpu: 0.0.40
codegen_flags: <defaults>
</compile_context>

<pallas_src>
import functools

import jax
import jax.numpy as jnp
from jax.experimental import pallas as pl
from jax.experimental.pallas import tpu as pltpu

_LANE = 128      # lane width: pad feature dims to multiples of this
_SUBLANE = 8     # sublane width: pad batch to multiples of this


def _round_up(n: int, m: int) -> int:
    return ((n + m - 1) // m) * m


def _fused_mlp_kernel(*refs, num_layers: int, final_relu_layer: int):
    """Whole MLP in one kernel body: z = relu?(z) @ W_i for every layer.

    refs = (x_ref, w_0_ref, ..., w_{L-1}_ref, o_ref); all blocks live in VMEM,
    so the activation `z` never leaves the chip between layers.
    """
    x_ref = refs[0]
    w_refs = refs[1:1 + num_layers]
    o_ref = refs[1 + num_layers]

    z = x_ref[...]
    for i in range(num_layers):                 # static unroll over layers
        if i < final_relu_layer:
            z = jnp.maximum(z, 0.0)             # no zeros_like broadcast
        z = jnp.dot(z, w_refs[i][...], preferred_element_type=jnp.float32)
    o_ref[...] = z.astype(o_ref.dtype)


def mlp_init(key, layer_sizes):
    """Deterministic weight init. Weight i: [in_i, out_i] (transposed vs torch)."""
    layer_sizes = [int(s) for s in layer_sizes]
    weights = []
    for i in range(len(layer_sizes) - 1):
        key, sub = jax.random.split(key)
        fan_in = layer_sizes[i]
        bound = 1.0 / (fan_in ** 0.5)
        w = jax.random.uniform(
            sub, (layer_sizes[i], layer_sizes[i + 1]),
            minval=-bound, maxval=bound, dtype=jnp.float32,
        )
        weights.append(w)
    return weights


@functools.partial(jax.jit, static_argnames=("final_relu", "batch_tile"))
def mlp_forward(x, weights, final_relu: bool = True, batch_tile: int = 512):
    """Mirrors MLP.forward: ReLU before every Linear when final_relu=True,
    before every Linear except the last when final_relu=False."""
    num_layers = len(weights)
    final_relu_layer = num_layers if final_relu else num_layers - 1

    batch, in_f = x.shape
    out_f = weights[-1].shape[1]

    # Padded (lane/sublane-aligned) shapes.
    dims = [in_f] + [w.shape[1] for w in weights]
    dims_p = [_round_up(d, _LANE) for d in dims]
    batch_p = _round_up(batch, _SUBLANE)
    if batch_p > batch_tile:
        batch_p = _round_up(batch_p, batch_tile)   # make it grid-tileable

    x_p = jnp.pad(
        x.astype(jnp.float32),
        ((0, batch_p - batch), (0, dims_p[0] - in_f)),
    )
    w_p = [
        jnp.pad(
            w.astype(jnp.float32),
            ((0, dims_p[i] - w.shape[0]), (0, dims_p[i + 1] - w.shape[1])),
        )
        for i, w in enumerate(weights)
    ]

    kernel = functools.partial(
        _fused_mlp_kernel,
        num_layers=num_layers,
        final_relu_layer=final_relu_layer,
    )
    out_shape = jax.ShapeDtypeStruct((batch_p, dims_p[-1]), jnp.float32)

    if batch_p <= batch_tile:
        # Gridless single-block call: one launch, no pipeline machinery,
        # everything resident in VMEM (tiny footprint here).
        out_p = pl.pallas_call(
            kernel,
            out_shape=out_shape,
            in_specs=[pl.BlockSpec(memory_space=pltpu.MemorySpace.VMEM)]
            * (1 + num_layers),
            out_specs=pl.BlockSpec(memory_space=pltpu.MemorySpace.VMEM),
        )(x_p, *w_p)
    else:
        # Large batch: tile the batch dim, keep weights resident per step,
        # mark the axis parallel so v7x's two TensorCores split the rows.
        grid = (batch_p // batch_tile,)
        in_specs = [pl.BlockSpec((batch_tile, dims_p[0]), lambda i: (i, 0))] + [
            pl.BlockSpec((dims_p[j], dims_p[j + 1]), lambda i: (0, 0))
            for j in range(num_layers)
        ]
        out_p = pl.pallas_call(
            kernel,
            out_shape=out_shape,
            grid=grid,
            in_specs=in_specs,
            out_specs=pl.BlockSpec((batch_tile, dims_p[-1]), lambda i: (i, 0)),
            compiler_params=pltpu.CompilerParams(
                dimension_semantics=("parallel",)
            ),
        )(x_p, *w_p)

    return out_p[:batch, :out_f]


if __name__ == "__main__":
    key = jax.random.PRNGKey(0)
    layer_sizes = [32, 64, 16]   # MLP([32, 64, 16], final_relu=True)
    batch = 8

    k_x, k_w = jax.random.split(key)
    x = jax.random.normal(k_x, (batch, layer_sizes[0]), dtype=jnp.float32)
    weights = mlp_init(k_w, layer_sizes)

    z = mlp_forward(x, weights, final_relu=True)
    jax.block_until_ready(z)

    # Pure-JAX reference check of the same semantics.
    ref = x
    for w in weights:
        ref = jnp.maximum(ref, 0.0) @ w
    assert z.shape == (batch, layer_sizes[-1])
    assert jnp.allclose(z, ref, atol=1e-5, rtol=1e-5)

    print("KERNEL_OK")
</pallas_src>

<mosaic_0001>
module attributes {stable_mosaic.version = 11 : i64} {
  func.func @_fused_mlp_kernel(%arg0: memref<8x128xf32, #tpu.memory_space<vmem>>, %arg1: memref<128x128xf32, #tpu.memory_space<vmem>>, %arg2: memref<128x128xf32, #tpu.memory_space<vmem>>, %arg3: memref<8x128xf32, #tpu.memory_space<vmem>>) attributes {dimension_semantics = [], scalar_prefetch = 0 : i64, scratch_operands = 0 : i64, tpu.core_type = #tpu.core_type<tc>} {
    %c0 = arith.constant 0 : index
    %c0_0 = arith.constant 0 : index
    %0 = vector.load %arg0[%c0, %c0_0] : memref<8x128xf32, #tpu.memory_space<vmem>>, vector<8x128xf32>
    %cst = arith.constant 0.000000e+00 : f32
    %1 = vector.broadcast %cst : f32 to vector<8x128xf32>
    %2 = arith.maximumf %0, %1 : vector<8x128xf32>
    %c0_1 = arith.constant 0 : index
    %c0_2 = arith.constant 0 : index
    %3 = vector.load %arg1[%c0_1, %c0_2] : memref<128x128xf32, #tpu.memory_space<vmem>>, vector<128x128xf32>
    %cst_3 = arith.constant dense<0.000000e+00> : vector<8x128xf32>
    %4 = tpu.matmul %2, %3, %cst_3 {dimension_numbers = #tpu.dot_dimension_numbers<[1], [0], [0], [1], [0, 0, 1, 1], [], []>} : vector<8x128xf32>, vector<128x128xf32>, vector<8x128xf32> -> vector<8x128xf32>
    %cst_4 = arith.constant 0.000000e+00 : f32
    %5 = vector.broadcast %cst_4 : f32 to vector<8x128xf32>
    %6 = arith.maximumf %4, %5 : vector<8x128xf32>
    %c0_5 = arith.constant 0 : index
    %c0_6 = arith.constant 0 : index
    %7 = vector.load %arg2[%c0_5, %c0_6] : memref<128x128xf32, #tpu.memory_space<vmem>>, vector<128x128xf32>
    %cst_7 = arith.constant dense<0.000000e+00> : vector<8x128xf32>
    %8 = tpu.matmul %6, %7, %cst_7 {dimension_numbers = #tpu.dot_dimension_numbers<[1], [0], [0], [1], [0, 0, 1, 1], [], []>} : vector<8x128xf32>, vector<128x128xf32>, vector<8x128xf32> -> vector<8x128xf32>
    %c0_8 = arith.constant 0 : index
    %c0_9 = arith.constant 0 : index
    %9 = vector.load %arg3[%c0_8, %c0_9] : memref<8x128xf32, #tpu.memory_space<vmem>>, vector<8x128xf32>
    tpu.vector_store %arg3[%c0_8, %c0_9], %8 {strides = array<i32>} : memref<8x128xf32, #tpu.memory_space<vmem>>, vector<8x128xf32>,
    return
  }
}

</mosaic_0001>

<llo_original>
// kernel: mlp_forward.1
$region0: #{mlp_forward.1}
  #allocation0 [shape = 'u32[]', space=smem, size = 0x4, offset = 0x4, fixed_abs, tag = 'smem constant byte address 0x4 - core index']
  #allocation1 [shape = 'u32[72,128]{1,0:T(1,128)}', space=vmem, size = 0x9000, scoped, tag = 'internal scratch']
  %s0 = inlined_call_operand.vmem [shape: f32[8,128], index: 0, kind: input, shape index: {}]
  %s1 = inlined_call_operand.vmem [shape: f32[128,128], index: 1, kind: input, shape index: {}]
  %s2 = inlined_call_operand.vmem [shape: f32[128,128], index: 2, kind: input, shape index: {}]
  %s3 = inlined_call_operand.hbm [shape: f32[8,128], index: 3, kind: output, shape index: {}]
  %s4 = sld [smem:[#allocation0]]
  $region22: #{mlp_forward.1} parent=0
    _
  %s6 = ssub.s32 1, %s4
  %s7 = scalar_select 0, %s6, %s4
  $region1: #{mlp_forward.1} parent=0
    #allocation2 [shape = 'u8[4096]{0}', space=vmem, size = 0x1000, scoped, tag = 'output window, operand 0, single buffered']
    #allocation3 [shape = 's32[1]{0}', space=sflag, size = 0x4, scoped, tag = 'scoped memory for mlp_forward.1']
    %8 = vsyncpa [#allocation3], 0
    // Predicated region
    $region2: #{mlp_forward.1} parent=1 // pred_check
      _
    $region3: #{mlp_forward.1} parent=1 // pred_check_branch
      %10 = sbr.rel (0) target = $region5
    $region4: #{mlp_forward.1} parent=1 // pred_region
      _
    $region5: #{mlp_forward.1} parent=1 // pred_fallthru
      _
    // Predicated region
    $region6: #{mlp_forward.1} parent=1 // pred_check
      _
    $region7: #{mlp_forward.1} parent=1 // pred_check_branch
      %12 = sbr.rel (0) target = $region9
    $region8: #{mlp_forward.1} parent=1 // pred_region
      _
    $region9: #{mlp_forward.1} parent=1 // pred_fallthru
      _
    // Predicated region
    $region10: #{mlp_forward.1} parent=1 // pred_check
      _
    $region11: #{mlp_forward.1} parent=1 // pred_check_branch
      %14 = sbr.rel (0) target = $region13
    $region12: #{mlp_forward.1} parent=1 // pred_region
      _
    $region13: #{mlp_forward.1} parent=1 // pred_fallthru
      _
    %v15 = vld [vmem:[%s0] sm:$0xff]
    %v16 = vmax.f32 %v15, 0.0
    %v17 = vld [vmem:[%s1] sm:$0xff]
    %v18 = vld [vmem:[%s1 + $0x8] sm:$0xff]
    %v19 = vld [vmem:[%s1 + $0x10] sm:$0xff]
    %v20 = vld [vmem:[%s1 + $0x18] sm:$0xff]
    %v21 = vld [vmem:[%s1 + $0x20] sm:$0xff]
    %v22 = vld [vmem:[%s1 + $0x28] sm:$0xff]
    %v23 = vld [vmem:[%s1 + $0x30] sm:$0xff]
    %v24 = vld [vmem:[%s1 + $0x38] sm:$0xff]
    %v25 = vld [vmem:[%s1 + $0x40] sm:$0xff]
    %v26 = vld [vmem:[%s1 + $0x48] sm:$0xff]
    %v27 = vld [vmem:[%s1 + $0x50] sm:$0xff]
    %v28 = vld [vmem:[%s1 + $0x58] sm:$0xff]
    %v29 = vld [vmem:[%s1 + $0x60] sm:$0xff]
    %v30 = vld [vmem:[%s1 + $0x68] sm:$0xff]
    %v31 = vld [vmem:[%s1 + $0x70] sm:$0xff]
    %v32 = vld [vmem:[%s1 + $0x78] sm:$0xff]
    %33 = vmatpush.msra.mxu0 %v32
    %34 = vmatpush.msra.mxu0 %v31
    %35 = vmatpush.msra.mxu0 %v30
    %36 = vmatpush.msra.mxu0 %v29
    %37 = vmatpush.msra.mxu0 %v28
    %38 = vmatpush.msra.mxu0 %v27
    %39 = vmatpush.msra.mxu0 %v26
    %40 = vmatpush.msra.mxu0 %v25
    %41 = vmatpush.msra.mxu0 %v24
    %42 = vmatpush.msra.mxu0 %v23
    %43 = vmatpush.msra.mxu0 %v22
    %44 = vmatpush.msra.mxu0 %v21
    %45 = vmatpush.msra.mxu0 %v20
    %46 = vmatpush.msra.mxu0 %v19
    %47 = vmatpush.msra.mxu0 %v18
    %48 = vmatpush.msra.mxu0 %v17
    %49 = vmatmul.f32.gmra.mxu0 %v16
    %v50 = vpop.f32.mrf.mxu0
    %v51 = vadd.f32 0.0, %v50
    %52 = vdwg.mxu0
    %v53 = vmax.f32 %v51, 0.0
    %v54 = vld [vmem:[%s2] sm:$0xff]
    %v55 = vld [vmem:[%s2 + $0x8] sm:$0xff]
    %v56 = vld [vmem:[%s2 + $0x10] sm:$0xff]
    %v57 = vld [vmem:[%s2 + $0x18] sm:$0xff]
    %v58 = vld [vmem:[%s2 + $0x20] sm:$0xff]
    %v59 = vld [vmem:[%s2 + $0x28] sm:$0xff]
    %v60 = vld [vmem:[%s2 + $0x30] sm:$0xff]
    %v61 = vld [vmem:[%s2 + $0x38] sm:$0xff]
    %v62 = vld [vmem:[%s2 + $0x40] sm:$0xff]
    %v63 = vld [vmem:[%s2 + $0x48] sm:$0xff]
    %v64 = vld [vmem:[%s2 + $0x50] sm:$0xff]
    %v65 = vld [vmem:[%s2 + $0x58] sm:$0xff]
    %v66 = vld [vmem:[%s2 + $0x60] sm:$0xff]
    %v67 = vld [vmem:[%s2 + $0x68] sm:$0xff]
    %v68 = vld [vmem:[%s2 + $0x70] sm:$0xff]
    %v69 = vld [vmem:[%s2 + $0x78] sm:$0xff]
    %70 = vmatpush.msra.mxu0 %v69
    %71 = vmatpush.msra.mxu0 %v68
    %72 = vmatpush.msra.mxu0 %v67
    %73 = vmatpush.msra.mxu0 %v66
    %74 = vmatpush.msra.mxu0 %v65
    %75 = vmatpush.msra.mxu0 %v64
    %76 = vmatpush.msra.mxu0 %v63
    %77 = vmatpush.msra.mxu0 %v62
    %78 = vmatpush.msra.mxu0 %v61
    %79 = vmatpush.msra.mxu0 %v60
    %80 = vmatpush.msra.mxu0 %v59
    %81 = vmatpush.msra.mxu0 %v58
    %82 = vmatpush.msra.mxu0 %v57
    %83 = vmatpush.msra.mxu0 %v56
    %84 = vmatpush.msra.mxu0 %v55
    %85 = vmatpush.msra.mxu0 %v54
    %86 = vmatmul.f32.gmra.mxu0 %v53
    %v87 = vpop.f32.mrf.mxu0
    %v88 = vadd.f32 0.0, %v87
    %89 = vdwg.mxu0
    %90 = vst [vmem:[#allocation2] sm:$0xff] %v88
    // Predicated region
    $region14: #{mlp_forward.1} parent=1 // pred_check
      _
    $region15: #{mlp_forward.1} parent=1 // pred_check_branch
      %92 = sbr.rel (0) target = $region17
    $region16: #{mlp_forward.1} parent=1 // pred_region
      %94 = vsyncadd [#allocation3], 0
      %s96 = sshll.u32 [#allocation2], 4
      %s97 = int_to_ptr.vmem [resolvable:$true] %s96
      %s98 = sshll.u32 %s3, 4
      %s99 = int_to_ptr.hbm [resolvable:$true] %s98
      %101 = dma.vmem_to_hbm [thread:$0]  %s97, 128, %s99, [#allocation3]
    $region17: #{mlp_forward.1} parent=1 // pred_fallthru
      _
    // Predicated region
    $region18: #{mlp_forward.1} parent=1 // pred_check
      _
    $region19: #{mlp_forward.1} parent=1 // pred_check_branch
      %103 = sbr.rel (0) target = $region21
    $region20: #{mlp_forward.1} parent=1 // pred_region
      %105 = dma.done [#allocation3], 128
    $region21: #{mlp_forward.1} parent=1 // pred_fallthru
      _
    %106 = vsyncpa [#allocation3], 1

</llo_original>
